<compile_context>
chip_gen: v7x
topology: tpu7x:2x2x1
jax: 0.10.0
libtpu: 0.0.40
codegen_flags: <defaults>
</compile_context>

<pallas_src>
import functools

import numpy as np
import jax
import jax.numpy as jnp
from jax.experimental import pallas as pl
from jax.experimental.pallas import tpu as pltpu


def make_position_encoding(d_model: int, n_pos: int = 200) -> jnp.ndarray:
    """Fixed PE table, shape (n_pos, d_model), float32.  Reproduces the PyTorch
    construction exactly.  NOTE: the original formula computes exp(p + div),
    which overflows to inf (-> NaN after sin/cos) for positions p >~ 88; this
    quirk is preserved intentionally and only matters for very long sequences."""
    pos = jnp.arange(0, n_pos, dtype=jnp.float32).reshape(-1, 1)          # (n_pos, 1)
    div = jnp.arange(0, d_model, 2, dtype=jnp.float32) / float(d_model)   # (d_model//2,)
    div = -div * np.log(10000.0)
    arg = jnp.exp(pos + div)                                              # (n_pos, d_model//2)
    pe = jnp.zeros((n_pos, d_model), dtype=jnp.float32)
    pe = pe.at[:, 0::2].set(jnp.sin(arg))
    pe = pe.at[:, 1::2].set(jnp.cos(arg))
    return pe


# --------------------------------------------------------------------------- #
# Kernel
# --------------------------------------------------------------------------- #
def _pe_add_kernel(x_ref, pe_ref, o_ref, *, tr: int, grid_rows: int):
    # x_ref / o_ref are (tr, C) tiles (batch dim squeezed in the BlockSpec).
    # pe_ref is the full (R_pad, C) PE table, resident in VMEM for the whole
    # call; slice out the row window matching this grid step.
    if grid_rows == 1:
        pe = pe_ref[...]
    else:
        start = pl.multiple_of(pl.program_id(0) * tr, tr)
        pe = pe_ref[pl.ds(start, tr), :]
    o_ref[...] = (x_ref[...] + pe).astype(o_ref.dtype)


# --------------------------------------------------------------------------- #
# Tiling helpers
# --------------------------------------------------------------------------- #
def _sublane_multiple(dtype) -> int:
    """Sublane packing multiple: 8 for 4-byte, 16 for 2-byte, 32 for 1-byte."""
    itemsize = jnp.dtype(dtype).itemsize
    return max(8, 32 // max(1, itemsize))


def _vmem_cap_bytes() -> int:
    """Per-generation scoped-VMEM budget, leaving headroom below physical."""
    try:
        phys = int(pltpu.get_tpu_info().vmem_capacity_bytes)
    except Exception:
        phys = 64 * 1024 * 1024  # conservative default (v7x per-TensorCore)
    return (48 << 20) if phys <= (64 << 20) else (96 << 20)


def _pick_row_tile(num_rows: int, bytes_per_row: int,
                   target_tile_bytes: int, sublane: int) -> int:
    """Row tile: either the full extent (small arrays, any alignment) or a
    fixed sublane-aligned tile combined with a cdiv grid (ragged tail OK)."""
    target_rows = max(
        sublane, (target_tile_bytes // max(1, bytes_per_row) // sublane) * sublane)
    if num_rows <= target_rows:
        return num_rows
    return target_rows


# --------------------------------------------------------------------------- #
# pallas_call wrapper
# --------------------------------------------------------------------------- #
def _pe_add_tiled(x3: jnp.ndarray, pe2: jnp.ndarray, *,
                  target_tile_bytes: int, vmem_cap_bytes: int,
                  donate_x: bool = False) -> jnp.ndarray:
    """x3: (B, R, C), pe2: (R, C).  Returns x3 + pe2[None, :, :]."""
    B, R, C = x3.shape
    assert pe2.shape == (R, C)

    itemsize = jnp.dtype(x3.dtype).itemsize
    sublane = _sublane_multiple(x3.dtype)
    bytes_per_row = C * itemsize

    tr = _pick_row_tile(R, bytes_per_row, target_tile_bytes, sublane)
    grid_rows = (R + tr - 1) // tr
    grid = (grid_rows, B)  # row tiles outer, batch inner

    # Pad PE rows so the in-kernel slice of the resident PE never reads out of
    # bounds when the last x row-tile is ragged.  PE is tiny (<= n_pos*D
    # elements) so this pad is negligible next to streaming x through HBM.
    R_pad = grid_rows * tr
    if R_pad != R:
        pe2 = jnp.pad(pe2, ((0, R_pad - R), (0, 0)))

    tile_bytes = tr * bytes_per_row
    pe_bytes = R_pad * C * jnp.dtype(pe2.dtype).itemsize
    # Live VMEM: x + out double-buffered (4 tiles) + resident PE (keep slack for
    # 2 copies + compiler scratch); clamp to the per-generation budget.
    vmem_needed = 4 * tile_bytes + 2 * pe_bytes + (4 << 20)
    vmem_limit = int(min(vmem_cap_bytes, max(32 << 20, vmem_needed)))

    kernel = functools.partial(_pe_add_kernel, tr=int(tr), grid_rows=int(grid_rows))

    cost = pl.CostEstimate(
        flops=B * R * C,
        transcendentals=0,
        bytes_accessed=(2 * B * R * C + R_pad * C) * itemsize,
    )

    return pl.pallas_call(
        kernel,
        out_shape=jax.ShapeDtypeStruct((B, R, C), x3.dtype),
        grid_spec=pltpu.PrefetchScalarGridSpec(
            num_scalar_prefetch=0,
            grid=grid,
            in_specs=[
                # x: batch dim squeezed -> kernel sees a (tr, C) tile.
                pl.BlockSpec((None, tr, C), lambda r, b: (b, r, 0)),
                # PE: full-array block, constant index_map -> DMA'd once and
                # VMEM-resident for the whole call.
                pl.BlockSpec((R_pad, C), lambda r, b: (0, 0)),
            ],
            out_specs=pl.BlockSpec((None, tr, C), lambda r, b: (b, r, 0)),
        ),
        compiler_params=pltpu.CompilerParams(
            # Row tiles shard across v7x's two TensorCores; batch stays the
            # sequential inner loop per core (PE stays resident, no re-DMA).
            dimension_semantics=("parallel", "arbitrary"),
            vmem_limit_bytes=vmem_limit,
        ),
        cost_estimate=cost,
        input_output_aliases=({0: 0} if donate_x else {}),
    )(x3, pe2)


def position_encoding_forward(x: jnp.ndarray, pe_table: jnp.ndarray, *,
                              target_tile_bytes: int = 6 << 20,
                              donate_x: bool = False) -> jnp.ndarray:
    """x: (B, S, D); pe_table: (n_pos, D) from make_position_encoding.
    Returns x + PE[None, :S, :]  (same as the PyTorch module's forward)."""
    B, S, D = x.shape
    n_pos = pe_table.shape[0]
    assert S <= n_pos, "sequence length exceeds PE table (same limit as PyTorch)"

    if x.dtype == jnp.bfloat16 and pe_table.dtype != jnp.bfloat16:
        # bf16 VPU on v6e/v7x: keep the add (and the PE HBM read / VMEM copy)
        # in bf16 when the activations are bf16.
        pe_table = pe_table.astype(jnp.bfloat16)

    vmem_cap = _vmem_cap_bytes()
    total = S * D
    if total % 128 == 0:
        # Lane-dense path: view each (S, D) plane as (R, 128) so the last block
        # dim is exactly 128 lanes -> unmasked vector stores.
        R = total // 128
        x3 = x.reshape(B, R, 128)
        pe2 = pe_table[:S].reshape(R, 128)  # identical row-major flatten as x
        out = _pe_add_tiled(x3, pe2, target_tile_bytes=target_tile_bytes,
                            vmem_cap_bytes=vmem_cap, donate_x=donate_x)
        return out.reshape(B, S, D)

    # Fallback (S*D not a multiple of 128): keep the native (S, D) layout.
    # Last dim < 128 lowers to masked partial stores — correct, just slower.
    # TODO(synk): split a lane-dense bulk pass + tiny masked tail (or fuse the
    # pad into a neighboring op) instead of running the whole op masked.
    return _pe_add_tiled(x, pe_table[:S], target_tile_bytes=target_tile_bytes,
                         vmem_cap_bytes=vmem_cap, donate_x=donate_x)


if __name__ == "__main__":
    n_pos = 200

    # --- Test 1: module-sized shapes (lane-dense path, single row tile) ---
    B, S, D = 2, 8, 32
    x = jax.random.normal(jax.random.PRNGKey(0), (B, S, D), dtype=jnp.float32)
    pe_table = make_position_encoding(D, n_pos)
    out = jax.block_until_ready(position_encoding_forward(x, pe_table))
    ref = x + pe_table[None, :S, :]
    np.testing.assert_allclose(np.asarray(out), np.asarray(ref), rtol=1e-6, atol=1e-6)

    # --- Test 2: multi-row-tile grid (forced tiny tile target), exact tiling ---
    B2, S2, D2 = 2, 32, 64          # R = 16 lane-dense rows, tr = 8, grid_rows = 2
    x2 = jax.random.normal(jax.random.PRNGKey(1), (B2, S2, D2), dtype=jnp.float32)
    pe_t2 = make_position_encoding(D2, n_pos)
    out2 = jax.block_until_ready(
        position_encoding_forward(x2, pe_t2, target_tile_bytes=2 * 1024))
    ref2 = x2 + pe_t2[None, :S2, :]
    np.testing.assert_allclose(np.asarray(out2), np.asarray(ref2), rtol=1e-6, atol=1e-6)

    # --- Test 3: ragged last row tile (R = 10, tr = 8 -> padded PE, cdiv grid) ---
    B3, S3, D3 = 2, 20, 64
    x3 = jax.random.normal(jax.random.PRNGKey(2), (B3, S3, D3), dtype=jnp.float32)
    pe_t3 = make_position_encoding(D3, n_pos)
    out3 = jax.block_until_ready(
        position_encoding_forward(x3, pe_t3, target_tile_bytes=2 * 1024))
    ref3 = x3 + pe_t3[None, :S3, :]
    np.testing.assert_allclose(np.asarray(out3), np.asarray(ref3), rtol=1e-6, atol=1e-6)

    # --- Test 4: non-128-aligned fallback path (native (S, D) layout) ---
    B4, S4, D4 = 2, 5, 24           # S*D = 120, not a multiple of 128
    x4 = jax.random.normal(jax.random.PRNGKey(3), (B4, S4, D4), dtype=jnp.float32)
    pe_t4 = make_position_encoding(D4, n_pos)
    out4 = jax.block_until_ready(position_encoding_forward(x4, pe_t4))
    ref4 = x4 + pe_t4[None, :S4, :]
    np.testing.assert_allclose(np.asarray(out4), np.asarray(ref4), rtol=1e-6, atol=1e-6)

    print("KERNEL_OK")
</pallas_src>

<mosaic_0001>
module attributes {stable_mosaic.version = 11 : i64} {
  func.func @_pe_add_kernel(%arg0: i32, %arg1: i32, %arg2: memref<1x2x128xf32, #tpu.memory_space<vmem>>, %arg3: memref<2x128xf32, #tpu.memory_space<vmem>>, %arg4: memref<1x2x128xf32, #tpu.memory_space<vmem>>) attributes {dimension_semantics = [#tpu.dimension_semantics<parallel>, #tpu.dimension_semantics<arbitrary>], iteration_bounds = array<i64: 1, 2>, scalar_prefetch = 0 : i64, scratch_operands = 0 : i64, tpu.core_type = #tpu.core_type<tc>, window_params = [{transform_indices = @transform_0, window_bounds = array<i64: 1, 2, 128>}, {pipeline_mode = #tpu.pipeline_mode<synchronous>, transform_indices = @transform_1, window_bounds = array<i64: 2, 128>}, {transform_indices = @transform_2, window_bounds = array<i64: 1, 2, 128>}]} {
    %c0 = arith.constant 0 : index
    %c0_0 = arith.constant 0 : index
    %0 = vector.load %arg3[%c0, %c0_0] : memref<2x128xf32, #tpu.memory_space<vmem>>, vector<2x128xf32>
    %c0_1 = arith.constant 0 : index
    %c0_2 = arith.constant 0 : index
    %c0_3 = arith.constant 0 : index
    %1 = vector.load %arg2[%c0_1, %c0_2, %c0_3] : memref<1x2x128xf32, #tpu.memory_space<vmem>>, vector<1x2x128xf32>
    %2 = vector.shape_cast %1 : vector<1x2x128xf32> to vector<2x128xf32>
    %3 = arith.addf %2, %0 : vector<2x128xf32>
    %c0_4 = arith.constant 0 : index
    %c0_5 = arith.constant 0 : index
    %c0_6 = arith.constant 0 : index
    %4 = vector.load %arg4[%c0_4, %c0_5, %c0_6] : memref<1x2x128xf32, #tpu.memory_space<vmem>>, vector<1x2x128xf32>
    %5 = vector.shape_cast %4 : vector<1x2x128xf32> to vector<2x128xf32>
    %6 = vector.shape_cast %3 : vector<2x128xf32> to vector<1x2x128xf32>
    tpu.vector_store %arg4[%c0_4, %c0_5, %c0_6], %6 {strides = array<i32>} : memref<1x2x128xf32, #tpu.memory_space<vmem>>, vector<1x2x128xf32>,
    return
  }
  func.func @transform_0(%arg0: i32, %arg1: i32) -> (i32, i32, i32) {
    %c0_i32 = arith.constant 0 : i32
    %c0_i32_0 = arith.constant 0 : i32
    return %arg1, %arg0, %c0_i32 : i32, i32, i32
  }
  func.func @transform_1(%arg0: i32, %arg1: i32) -> (i32, i32) {
    %c0_i32 = arith.constant 0 : i32
    %c0_i32_0 = arith.constant 0 : i32
    %c0_i32_1 = arith.constant 0 : i32
    return %c0_i32, %c0_i32_0 : i32, i32
  }
  func.func @transform_2(%arg0: i32, %arg1: i32) -> (i32, i32, i32) {
    %c0_i32 = arith.constant 0 : i32
    %c0_i32_0 = arith.constant 0 : i32
    return %arg1, %arg0, %c0_i32 : i32, i32, i32
  }
}

</mosaic_0001>

<llo_original>
// kernel: tpu_custom_call.1
$region0: #{tpu_custom_call.1}
  #allocation0 [shape = 'u32[]', space=smem, size = 0x4, offset = 0x4, fixed_abs, tag = 'smem constant byte address 0x4 - core index']
  #allocation1 [shape = 'u32[144,128]{1,0:T(1,128)}', space=vmem, size = 0x12000, scoped, tag = 'internal scratch']
  %s0 = inlined_call_operand.hbm [shape: f32[2,2,128], index: 0, kind: input, shape index: {}]
  %s1 = inlined_call_operand.vmem [shape: f32[2,128], index: 1, kind: input, shape index: {}]
  %s2 = inlined_call_operand.hbm [shape: f32[2,2,128], index: 2, kind: output, shape index: {}]
  %s3 = sld [smem:[#allocation0]]
  $region45: #{tpu_custom_call.1} parent=0
    _
  %s5 = ssub.s32 1, %s3
  %s6 = scalar_select 0, %s5, %s3
  $region1: #{tpu_custom_call.1} parent=0
    #allocation2 [shape = 'u8[2048]{0}', space=vmem, size = 0x800, scoped, tag = 'input window, operand 0']
    #allocation3 [shape = 's32[2]{0}', space=sflag, size = 0x8, scoped, tag = 'scoped memory for tpu_custom_call.1']
    #allocation4 [shape = 's32[2]{0}', space=sflag, size = 0x8, scoped, tag = 'scoped memory for tpu_custom_call.1']
    #allocation5 [shape = 'u8[2048]{0}', space=vmem, size = 0x800, scoped, tag = 'output window, operand 0']
    %7 = vsyncpa [#allocation3], 0
    %s8 = scalar_lea.sflag [#allocation3], 1
    %9 = vsyncpa %s8, 0
    %10 = vsyncpa [#allocation4], 0
    %s11 = scalar_lea.sflag [#allocation4], 1
    %12 = vsyncpa %s11, 0
    loop: start=0, step=1, limit=4
    $region2: #{tpu_custom_call.1} parent=1 // loop_pre_header
      _
    $region3: #{tpu_custom_call.1} parent=1 // loop_header
      %s14 = sphi 0, %s18
      %p15 = scmp.ge.s32.totalorder %s14, 4
      %s21 = sphi 0, %s33
      %s22 = sphi 0, %s29
      %s23 = sphi 0, %s21
      %s24 = sphi 0, %s22
      %s25 = sphi 0, %s23
      %s26 = sphi 0, %s24
      %s38 = sphi 0, %s40
      %s41 = sphi 0, %s38
      %s42 = sphi 0, %s41
      %s58 = sphi 0, %s42
      %s62 = sphi 0, %s62
      %s64 = sphi 0, %s62
      %s65 = sphi 0, %s64
      %s79 = sphi 0, %s65
      %s87 = sphi 0, %s89
      %s90 = sphi 0, %s87
      %s91 = sphi 0, %s90
      %s107 = sphi 0, %s91
    $region4: #{tpu_custom_call.1} parent=1 // loop_header_branch
      %17 = sbr.rel (%p15) target = $region8
    $region5: #{tpu_custom_call.1} parent=1 // loop_body
      %s19 = ssub.s32 %s14, 1
      %s20 = ssub.s32 %s14, 2
      %s27 = sadd.s32 1, %s22
      %p28 = scmp.ge.s32.totalorder %s27, 2
      %s29 = scalar_select %p28, 0, %s27
      %s30 = sadd.s32 1, %s21
      %s31 = scalar_select %p28, %s30, %s21
      %p32 = scmp.ge.s32.totalorder %s31, 1
      %s33 = scalar_select %p32, 0, %s31
      %s34 = ssub.s32 %s22, %s29
      %s35 = ssub.s32 %s21, %s33
      %s36 = sor.u32 %s34, %s35
      %p37 = scmp.eq.s32.totalorder %s36, 0
      %s39 = sadd.s32 %s38, 1
      %s40 = scalar_select %p37, %s38, %s39
      %p43 = pneg %p37
      %p44 = scmp.eq.s32.totalorder %s14, 1
      %p45 = por %p43, %p44
      %p46 = scmp.ne.s32.totalorder %s38, %s41
      %p47 = scmp.eq.s32.totalorder %s14, 0
      %p48 = por %p46, %p47
      %p49 = scmp.ne.s32.totalorder %s38, %s41
      %p50 = scmp.eq.s32.totalorder %s19, 1
      %p51 = por %p49, %p50
      %p52 = scmp.ne.s32.totalorder %s41, %s42
      %p53 = scmp.eq.s32.totalorder %s19, 0
      %p54 = por %p52, %p53
      %p55 = scmp.ne.s32.totalorder %s41, %s42
      %p56 = scmp.eq.s32.totalorder %s20, 1
      %p57 = por %p55, %p56
      %p59 = scmp.ne.s32.totalorder %s42, %s58
      %p60 = scmp.eq.s32.totalorder %s20, 0
      %p61 = por %p59, %p60
      %s63 = sadd.s32 %s62, 1
      %p66 = scmp.eq.s32.totalorder %s14, 1
      %p67 = scmp.ne.s32.totalorder %s62, %s64
      %p68 = scmp.eq.s32.totalorder %s14, 0
      %p69 = por %p67, %p68
      %p70 = scmp.ne.s32.totalorder %s62, %s64
      %p71 = scmp.eq.s32.totalorder %s19, 1
      %p72 = por %p70, %p71
      %p73 = scmp.ne.s32.totalorder %s64, %s65
      %p74 = scmp.eq.s32.totalorder %s19, 0
      %p75 = por %p73, %p74
      %p76 = scmp.ne.s32.totalorder %s64, %s65
      %p77 = scmp.eq.s32.totalorder %s20, 1
      %p78 = por %p76, %p77
      %p80 = scmp.ne.s32.totalorder %s65, %s79
      %p81 = scmp.eq.s32.totalorder %s20, 0
      %p82 = por %p80, %p81
      %s83 = ssub.s32 %s22, %s29
      %s84 = ssub.s32 %s21, %s33
      %s85 = sor.u32 %s83, %s84
      %p86 = scmp.eq.s32.totalorder %s85, 0
      %s88 = sadd.s32 %s87, 1
      %s89 = scalar_select %p86, %s87, %s88
      %p92 = pneg %p86
      %p93 = scmp.eq.s32.totalorder %s14, 1
      %p94 = por %p92, %p93
      %p95 = scmp.ne.s32.totalorder %s87, %s90
      %p96 = scmp.eq.s32.totalorder %s14, 0
      %p97 = por %p95, %p96
      %p98 = scmp.ne.s32.totalorder %s87, %s90
      %p99 = scmp.eq.s32.totalorder %s19, 1
      %p100 = por %p98, %p99
      %p101 = scmp.ne.s32.totalorder %s90, %s91
      %p102 = scmp.eq.s32.totalorder %s19, 0
      %p103 = por %p101, %p102
      %p104 = scmp.ne.s32.totalorder %s90, %s91
      %p105 = scmp.eq.s32.totalorder %s20, 1
      %p106 = por %p104, %p105
      %p108 = scmp.ne.s32.totalorder %s91, %s107
      %p109 = scmp.eq.s32.totalorder %s20, 0
      %p110 = por %p108, %p109
      %p111 = scmp.le.s32.totalorder 1, %s14
      %p112 = scmp.lt.s32.totalorder %s14, 3
      %p113 = pnand %p111, %p112
      %p114 = pneg %p113
      // Predicated region
      $region9: #{tpu_custom_call.1} parent=5 // pred_check
        _
      $region10: #{tpu_custom_call.1} parent=5 // pred_check_branch
        %116 = sbr.rel (%p113) target = $region12
      $region11: #{tpu_custom_call.1} parent=5 // pred_region
        %s117 = ssub.s32 %s14, 1
        // Predicated region
        $region13: #{tpu_custom_call.1} parent=11 // pred_check
          %p118 = pneg %p75
        $region14: #{tpu_custom_call.1} parent=11 // pred_check_branch
          %120 = sbr.rel (%p118) target = $region16
        $region15: #{tpu_custom_call.1} parent=11 // pred_region
          _
        $region16: #{tpu_custom_call.1} parent=11 // pred_fallthru
          _
      $region12: #{tpu_custom_call.1} parent=5 // pred_fallthru
        _
      %p121 = scmp.lt.s32.totalorder %s14, 2
      // Predicated region
      $region17: #{tpu_custom_call.1} parent=5 // pred_check
        %p122 = pneg %p121
      $region18: #{tpu_custom_call.1} parent=5 // pred_check_branch
        %124 = sbr.rel (%p122) target = $region20
      $region19: #{tpu_custom_call.1} parent=5 // pred_region
        // Predicated region
        $region21: #{tpu_custom_call.1} parent=19 // pred_check
          %p125 = pneg %p48
        $region22: #{tpu_custom_call.1} parent=19 // pred_check_branch
          %127 = sbr.rel (%p125) target = $region24
        $region23: #{tpu_custom_call.1} parent=19 // pred_region
          %s128 = sand.u32 %s38, 1
          %s129 = scalar_lea.sflag [#allocation3], %s128
          %s130 = sand.u32 %s38, 1
          %s131 = smul.addr %s130, 2
          %s132 = scalar_lea.vmem [#allocation2], %s131
          %s134 = ssub.s32 32, 32
          %135 = vsyncadd %s129, %s134
          %s136 = sadd.s32 %s21, %s22
          %s137 = smul.addr %s136, 32
          %s138 = scalar_lea.hbm %s0, %s137
          %s140 = sshll.u32 %s132, 4
          %s141 = int_to_ptr.vmem [resolvable:$true] %s140
          %143 = dma.hbm_to_vmem [thread:$0]  %s138, 32, %s141, %s129
        $region24: #{tpu_custom_call.1} parent=19 // pred_fallthru
          _
      $region20: #{tpu_custom_call.1} parent=5 // pred_fallthru
        _
      %p144 = scmp.le.s32.totalorder 1, %s14
      %p145 = scmp.lt.s32.totalorder %s14, 3
      %p146 = pnand %p144, %p145
      %p147 = pneg %p146
      // Predicated region
      $region25: #{tpu_custom_call.1} parent=5 // pred_check
        _
      $region26: #{tpu_custom_call.1} parent=5 // pred_check_branch
        %149 = sbr.rel (%p146) target = $region28
      $region27: #{tpu_custom_call.1} parent=5 // pred_region
        %s150 = ssub.s32 %s14, 1
        %s151 = sand.u32 %s41, 1
        %s152 = scalar_lea.sflag [#allocation3], %s151
        %s153 = sand.u32 %s41, 1
        %s154 = smul.addr %s153, 2
        %s155 = scalar_lea.vmem [#allocation2], %s154
        // Predicated region
        $region29: #{tpu_custom_call.1} parent=27 // pred_check
          %p156 = pneg %p54
        $region30: #{tpu_custom_call.1} parent=27 // pred_check_branch
          %158 = sbr.rel (%p156) target = $region32
        $region31: #{tpu_custom_call.1} parent=27 // pred_region
          %159 = dma.done %s152, 32
        $region32: #{tpu_custom_call.1} parent=27 // pred_fallthru
          _
        %s160 = sand.u32 %s41, 1
        %s161 = scalar_lea.sflag [#allocation3], %s160
        %s162 = sand.u32 %s41, 1
        %s163 = smul.addr %s162, 2
        %s164 = scalar_lea.vmem [#allocation2], %s163
        %p165 = pneg %p54
        %p166 = pneg %p51
        %p167 = pneg %p75
        %p168 = pneg %p72
        %p169 = pneg %p103
        %p170 = pneg %p100
        %s171 = sand.u32 %s90, 1
        %s172 = scalar_lea.sflag [#allocation4], %s171
        %s173 = sand.u32 %s90, 1
        %s174 = smul.addr %s173, 2
        %s175 = scalar_lea.vmem [#allocation5], %s174
        %v176 = vld [vmem:[%s1] sm:$0x3]
        %v177 = vld [vmem:[%s155] sm:$0x3]
        %v178 = vadd.f32 %v177, %v176
        %179 = vst [vmem:[%s175] sm:$0x3] %v178
        %s180 = sand.u32 %s90, 1
        %s181 = scalar_lea.sflag [#allocation4], %s180
        %s182 = sand.u32 %s90, 1
        %s183 = smul.addr %s182, 2
        %s184 = scalar_lea.vmem [#allocation5], %s183
        // Predicated region
        $region33: #{tpu_custom_call.1} parent=27 // pred_check
          %p185 = pneg %p100
        $region34: #{tpu_custom_call.1} parent=27 // pred_check_branch
          %187 = sbr.rel (%p185) target = $region36
        $region35: #{tpu_custom_call.1} parent=27 // pred_region
          %s189 = ssub.s32 32, 32
          %190 = vsyncadd %s181, %s189
          %s191 = sadd.s32 %s23, %s24
          %s192 = smul.addr %s191, 32
          %s193 = scalar_lea.hbm %s2, %s192
          %s195 = sshll.u32 %s184, 4
          %s196 = int_to_ptr.vmem [resolvable:$true] %s195
          %198 = dma.vmem_to_hbm [thread:$0]  %s196, 32, %s193, %s181
        $region36: #{tpu_custom_call.1} parent=27 // pred_fallthru
          _
      $region28: #{tpu_custom_call.1} parent=5 // pred_fallthru
        _
      %p199 = scmp.le.s32.totalorder 2, %s14
      // Predicated region
      $region37: #{tpu_custom_call.1} parent=5 // pred_check
        %p200 = pneg %p199
      $region38: #{tpu_custom_call.1} parent=5 // pred_check_branch
        %202 = sbr.rel (%p200) target = $region40
      $region39: #{tpu_custom_call.1} parent=5 // pred_region
        %s203 = ssub.s32 %s14, 2
        // Predicated region
        $region41: #{tpu_custom_call.1} parent=39 // pred_check
          %p204 = pneg %p106
        $region42: #{tpu_custom_call.1} parent=39 // pred_check_branch
          %206 = sbr.rel (%p204) target = $region44
        $region43: #{tpu_custom_call.1} parent=39 // pred_region
          %s207 = sand.u32 %s91, 1
          %s208 = scalar_lea.sflag [#allocation4], %s207
          %s209 = sand.u32 %s91, 1
          %s210 = smul.addr %s209, 2
          %s211 = scalar_lea.vmem [#allocation5], %s210
          %212 = dma.done %s208, 32
        $region44: #{tpu_custom_call.1} parent=39 // pred_fallthru
          _
      $region40: #{tpu_custom_call.1} parent=5 // pred_fallthru
        _
    $region6: #{tpu_custom_call.1} parent=1 // loop_footer
      %s18 = sadd.s32 1, %s14
    $region7: #{tpu_custom_call.1} parent=1 // loop_footer_branch
      %13 = sbr.rel target = $region3
    $region8: #{tpu_custom_call.1} parent=1 // loop_exit
      _
    %213 = vsyncpa [#allocation3], 1
    %s214 = scalar_lea.sflag [#allocation3], 1
    %215 = vsyncpa %s214, 1
    %216 = vsyncpa [#allocation4], 1
    %s217 = scalar_lea.sflag [#allocation4], 1
    %218 = vsyncpa %s217, 1

</llo_original>
